<compile_context>
chip_gen: v7x
topology: tpu7x:2x2x1
jax: 0.10.0
libtpu: 0.0.40
codegen_flags: <defaults>
</compile_context>

<pallas_src>
import jax
import jax.numpy as jnp
from jax.experimental import pallas as pl
from jax.experimental.pallas import tpu as pltpu

_SUBLANES = 8          # row tiles must be multiples of 8 (or the full extent)
_MAX_TILE_ROWS = 8192  # (8192, 1) f32 block -> ~4 MiB VMEM/buffer after lane pad


def _baseline_kernel(bias_ref, out_ref):
    # bias_ref: SMEM (1,) float32 scalar parameter
    # out_ref : VMEM (tile_rows, 1) float32 output tile (final layout, 1 pass)
    b = bias_ref[0] + 1.0                        # scalar add on the scalar unit
    out_ref[...] = jnp.broadcast_to(             # splat store over the tile
        b.astype(out_ref.dtype), out_ref.shape)


def baseline_forward(bias, bs: int):
    """Equivalent of Baseline.forward(bs) -> (bias + 1.0).expand(bs, 1)."""
    bias = bias.astype(jnp.float32)

    if bs <= _MAX_TILE_ROWS:
        # Single block covering the full array (full-extent dims are exempt
        # from the (8,128) divisibility rule).
        tile_rows = bs
    else:
        tile_rows = _MAX_TILE_ROWS               # multiple of _SUBLANES

    grid = (pl.cdiv(bs, tile_rows),)             # ragged last block is masked

    out = pl.pallas_call(
        _baseline_kernel,
        out_shape=jax.ShapeDtypeStruct((bs, 1), jnp.float32),
        grid=grid,
        in_specs=[pl.BlockSpec(memory_space=pltpu.MemorySpace.SMEM)],
        out_specs=pl.BlockSpec((tile_rows, 1), lambda i: (i, 0)),
        compiler_params=pltpu.CompilerParams(
            dimension_semantics=("parallel",)),
    )(bias)
    return out


if __name__ == "__main__":
    # Deterministic parameter init, matching nn.Parameter(torch.ones(1)).
    key = jax.random.PRNGKey(0)  # unused: init is deterministic ones
    bias = jnp.ones((1,), dtype=jnp.float32)

    # Small batch (bs=2): single full-extent block.
    bs_small = 2
    out_small = jax.block_until_ready(baseline_forward(bias, bs_small))
    expected_small = jnp.full((bs_small, 1), 2.0, dtype=jnp.float32)
    assert out_small.shape == (bs_small, 1), out_small.shape
    assert out_small.dtype == jnp.float32, out_small.dtype
    assert bool(jnp.allclose(out_small, expected_small)), out_small

    # Larger batch: exercises the multi-step grid plus a ragged (masked)
    # last block (10000 = 8192 + 1808).
    bs_big = 10000
    out_big = jax.block_until_ready(baseline_forward(bias, bs_big))
    expected_big = jnp.full((bs_big, 1), 2.0, dtype=jnp.float32)
    assert out_big.shape == (bs_big, 1), out_big.shape
    assert out_big.dtype == jnp.float32, out_big.dtype
    assert bool(jnp.allclose(out_big, expected_big))

    print("KERNEL_OK")
</pallas_src>

<mosaic_0001>
module attributes {stable_mosaic.version = 11 : i64} {
  func.func @_baseline_kernel(%arg0: i32, %arg1: memref<1xf32, #tpu.memory_space<smem>>, %arg2: memref<2x1xf32, #tpu.memory_space<vmem>>) attributes {dimension_semantics = [#tpu.dimension_semantics<parallel>], iteration_bounds = array<i64: 1>, scalar_prefetch = 0 : i64, scratch_operands = 0 : i64, tpu.core_type = #tpu.core_type<tc>, window_params = [{transform_indices = @transform_0, window_bounds = array<i64: 1>}, {transform_indices = @transform_1, window_bounds = array<i64: 2, 1>}]} {
    %c0 = arith.constant 0 : index
    %0 = memref.load %arg1[%c0] : memref<1xf32, #tpu.memory_space<smem>>
    %cst = arith.constant 1.000000e+00 : f32
    %1 = arith.addf %0, %cst : f32
    %2 = vector.broadcast %1 : f32 to vector<2x1xf32>
    %c0_0 = arith.constant 0 : index
    %c0_1 = arith.constant 0 : index
    %3 = vector.load %arg2[%c0_0, %c0_1] : memref<2x1xf32, #tpu.memory_space<vmem>>, vector<2x1xf32>
    tpu.vector_store %arg2[%c0_0, %c0_1], %2 {strides = array<i32>} : memref<2x1xf32, #tpu.memory_space<vmem>>, vector<2x1xf32>,
    return
  }
  func.func @transform_0(%arg0: i32) -> i32 {
    %c0_i32 = arith.constant 0 : i32
    %c0_i32_0 = arith.constant 0 : i32
    return %c0_i32 : i32
  }
  func.func @transform_1(%arg0: i32) -> (i32, i32) {
    %c0_i32 = arith.constant 0 : i32
    %c0_i32_0 = arith.constant 0 : i32
    return %arg0, %c0_i32 : i32, i32
  }
}

</mosaic_0001>

<llo_original>
// kernel: tpu_custom_call.1
$region0: #{tpu_custom_call.1}
  #allocation0 [shape = 'u32[]', space=smem, size = 0x4, offset = 0x4, fixed_abs, tag = 'smem constant byte address 0x4 - core index']
  #allocation1 [shape = 'u32[144,128]{1,0:T(1,128)}', space=vmem, size = 0x12000, scoped, tag = 'internal scratch']
  #allocation2 [shape = 'f32[1]{0:T(128)S(6)}', space=smem, size = 0x200, scoped, tag = 'scoped memory for tpu_custom_call.1']
  %s0 = inlined_call_operand.<no memory space> [shape: f32[1], index: 0, kind: input, shape index: {}]
  %s1 = inlined_call_operand.vmem [shape: f32[2,1], index: 1, kind: output, shape index: {}]
  %s2 = sld [smem:[#allocation0]]
  $region14: #{tpu_custom_call.1} parent=0
    _
  %s4 = ssub.s32 1, %s2
  %s5 = scalar_select 0, %s4, %s2
  %6 = sst [smem:[#allocation2]] %s0
  // Predicated region
  $region2: #{tpu_custom_call.1} parent=0 // pred_check
    _
  $region3: #{tpu_custom_call.1} parent=0 // pred_check_branch
    %8 = sbr.rel (0) target = $region5
  $region4: #{tpu_custom_call.1} parent=0 // pred_region
    _
  $region5: #{tpu_custom_call.1} parent=0 // pred_fallthru
    _
  %s9 = sld [smem:[#allocation2]]
  %s10 = sadd.f32 %s9, 1.0
  %v11 = vstv %s10
  %vm12 = vcmask 1024
  %13 = vst.msk [vmem:[%s1] sm:$0x3] %vm12, %v11
  // Predicated region
  $region6: #{tpu_custom_call.1} parent=0 // pred_check
    _
  $region7: #{tpu_custom_call.1} parent=0 // pred_check_branch
    %15 = sbr.rel (0) target = $region9
  $region8: #{tpu_custom_call.1} parent=0 // pred_region
    _
  $region9: #{tpu_custom_call.1} parent=0 // pred_fallthru
    _
  // Predicated region
  $region10: #{tpu_custom_call.1} parent=0 // pred_check
    _
  $region11: #{tpu_custom_call.1} parent=0 // pred_check_branch
    %17 = sbr.rel (0) target = $region13
  $region12: #{tpu_custom_call.1} parent=0 // pred_region
    _
  $region13: #{tpu_custom_call.1} parent=0 // pred_fallthru
    _

</llo_original>
